<compile_context>
chip_gen: v5e
topology: v5e:2x2
jax: 0.10.0
libtpu: 0.0.40
codegen_flags: <defaults>
</compile_context>

<pallas_src>
import functools

import jax
import jax.numpy as jnp
from jax.experimental import pallas as pl
from jax.experimental.pallas import tpu as pltpu

_BN_EPS = 1e-5


# ---------------------------------------------------------------------------
# Weight preparation (runs once per layer; everything here is a constant
# for inference).
# ---------------------------------------------------------------------------
def _fold_bn(gamma, beta, mean, var):
    s = gamma / jnp.sqrt(var + _BN_EPS)
    return s, beta - mean * s


def _band_matrices(dw_f, W, Wo, stride):
    """Depthwise 3x3 conv (pad=1 along W) as three banded matmul weights.

    Returns S of shape (3, W*C, Wo*C) with
      S[kh, w_in*C + c, w_out*C + c] = dw_f[kh, kw, c]  where
      w_in = stride*w_out + kw - 1  (0 <= kw <= 2, 0 <= w_in < W), else 0.
    """
    C = dw_f.shape[-1]
    w_in = jnp.arange(W)
    w_out = jnp.arange(Wo)
    kw = jnp.arange(3)
    # sel[kw, w_in, w_out] = 1 iff w_in == stride*w_out + kw - 1
    sel = (w_in[None, :, None] ==
           stride * w_out[None, None, :] + kw[:, None, None] - 1)
    sel = sel.astype(jnp.float32)
    band = jnp.einsum("kio,hkc->hioc", sel, dw_f.astype(jnp.float32))  # (3,W,Wo,C)
    eye_c = jnp.eye(C, dtype=jnp.float32)
    S = jnp.einsum("hioc,cd->hicod", band, eye_c)                      # (3,W,C,Wo,C)
    return S.reshape(3, W * C, Wo * C)


def prepare_block_params(dw_w, pw_w, bn1, bn2, image_hw, stride=1,
                         matmul_dtype=jnp.bfloat16):
    """Fold BN + pack weights once.  dw_w: (C,1,3,3), pw_w: (Cout,C,1,1)."""
    H, W = image_hw
    C = dw_w.shape[0]
    Cout = pw_w.shape[0]
    Ho = (H - 1) // stride + 1          # kernel 3, pad 1
    Wo = (W - 1) // stride + 1
    WC, WoC, WoCo = W * C, Wo * C, Wo * Cout

    # Explicit size gate (the kron/banded packing wastes O(W) MXU FLOPs and
    # O(W^2) weight bytes; fine for toy CIFAR shapes, not for real layers).
    if WoC > 512 or WoCo > 2048:
        raise NotImplementedError(
            "Banded/kron packing only targets small W*C / W*Cout; "
            "TODO(synk): channels-on-lanes kernel for large channel counts.")

    s1, b1 = _fold_bn(*bn1)
    s2, b2 = _fold_bn(*bn2)

    # Fold BN scales into the conv weights (exact for inference-mode BN).
    dw_f = jnp.transpose(dw_w[:, 0], (1, 2, 0)) * s1[None, None, :]   # (3,3,C)
    pw_f = jnp.transpose(pw_w[:, :, 0, 0], (1, 0)) * s2[None, :]      # (C,Cout)

    S = _band_matrices(dw_f, W, Wo, stride)                           # (3,WC,WoC)
    b1_row = jnp.tile(b1, Wo)[None, :].astype(jnp.float32)            # (1,WoC)
    P = jnp.kron(jnp.eye(Wo, dtype=jnp.float32), pw_f.astype(jnp.float32))
    b2_row = jnp.tile(b2, Wo)[None, :].astype(jnp.float32)            # (1,WoCo)

    w1 = jnp.concatenate([S.reshape(3 * WC, WoC), b1_row], axis=0)    # (3*WC+1,WoC)
    w2 = jnp.concatenate([P, b2_row], axis=0)                         # (WoC+1,WoCo)

    cfg = dict(C=C, Cout=Cout, H=H, W=W, Ho=Ho, Wo=Wo, stride=stride,
               matmul_dtype=matmul_dtype)
    return {"w1": w1.astype(matmul_dtype), "w2": w2.astype(matmul_dtype),
            "cfg": cfg}


# ---------------------------------------------------------------------------
# The fused kernel: whole image per grid step, all heavy lifting on the MXU.
# ---------------------------------------------------------------------------
def _block_kernel(x_ref, w1_ref, w2_ref, o_ref, *, H, WC, Ho, WoC, stride,
                  matmul_dtype):
    # x_ref : (H, W*C)                 one image, channels fastest
    # w1_ref: (3*WC + 1, WoC)          [S_0; S_1; S_2; b1-row], BN1 folded
    # w2_ref: (WoC + 1, Wo*Cout)       [kron pointwise; b2-row], BN2 folded
    # o_ref : (Ho, Wo*Cout)            lane-dense output
    xv = x_ref[...].astype(matmul_dtype)

    # Zero halo rows for kh = 0 / kh = 2 (top always, bottom only if needed).
    bot = max(0, stride * (Ho - 1) + 2 - H)
    pieces = [jnp.zeros((1, WC), matmul_dtype), xv]
    if bot:
        pieces.append(jnp.zeros((bot, WC), matmul_dtype))
    xpad = jnp.concatenate(pieces, axis=0)        # (1 + H + bot, WC)

    # Depthwise 3x3 as three banded MXU matmuls (f32 accumulate).
    span = stride * (Ho - 1) + 1
    acc = None
    for kh in range(3):
        xk = jax.lax.slice(xpad, (kh, 0), (kh + span, WC), (stride, 1))  # (Ho,WC)
        sk = w1_ref[kh * WC:(kh + 1) * WC, :]                            # (WC,WoC)
        d = jnp.dot(xk, sk, preferred_element_type=jnp.float32)
        acc = d if acc is None else acc + d

    b1 = w1_ref[3 * WC:3 * WC + 1, :].astype(jnp.float32)                # (1,WoC)
    h = jnp.maximum(acc + b1, 0.0)

    # Pointwise 1x1 conv as one lane-packed MXU matmul, + BN2 bias + ReLU.
    p = w2_ref[0:WoC, :]                                                 # (WoC,WoCo)
    b2 = w2_ref[WoC:WoC + 1, :].astype(jnp.float32)
    y = jnp.dot(h.astype(matmul_dtype), p, preferred_element_type=jnp.float32)
    o_ref[...] = jnp.maximum(y + b2, 0.0).astype(o_ref.dtype)


def apply_block(x_nchw, params):
    """Steady-state path: params come from prepare_block_params()."""
    cfg = params["cfg"]
    w1, w2 = params["w1"], params["w2"]
    C, Cout = cfg["C"], cfg["Cout"]
    H, W, Ho, Wo = cfg["H"], cfg["W"], cfg["Ho"], cfg["Wo"]
    stride = cfg["stride"]
    N = x_nchw.shape[0]
    WC, WoC, WoCo = W * C, Wo * C, Wo * Cout

    # Layout plumbing only; in a full NHWC model these transposes disappear.
    x = jnp.transpose(x_nchw, (0, 2, 3, 1)).reshape(N, H, WC)

    kernel = functools.partial(_block_kernel, H=H, WC=WC, Ho=Ho, WoC=WoC,
                               stride=stride, matmul_dtype=cfg["matmul_dtype"])
    out = pl.pallas_call(
        kernel,
        out_shape=jax.ShapeDtypeStruct((N, Ho, WoCo), x_nchw.dtype),
        grid_spec=pltpu.PrefetchScalarGridSpec(
            num_scalar_prefetch=0,
            grid=(N,),
            in_specs=[
                pl.BlockSpec((None, H, WC), lambda n: (n, 0, 0)),
                pl.BlockSpec(w1.shape, lambda n: (0, 0)),
                pl.BlockSpec(w2.shape, lambda n: (0, 0)),
            ],
            out_specs=pl.BlockSpec((None, Ho, WoCo), lambda n: (n, 0, 0)),
        ),
        compiler_params=pltpu.CompilerParams(
            dimension_semantics=("parallel",)),
    )(x, w1, w2)

    return jnp.transpose(out.reshape(N, Ho, Wo, Cout), (0, 3, 1, 2))


def mobilenet_block(x_nchw, dw_w, pw_w, bn1, bn2, stride=1,
                    matmul_dtype=jnp.bfloat16):
    """Convenience wrapper matching the PyTorch Block.forward (inference BN)."""
    params = prepare_block_params(dw_w, pw_w, bn1, bn2, x_nchw.shape[2:],
                                  stride=stride, matmul_dtype=matmul_dtype)
    return apply_block(x_nchw, params)


# ---------------------------------------------------------------------------
# Pure-JAX reference (matches the PyTorch forward, inference-mode BN).
# ---------------------------------------------------------------------------
def _reference(x, dw_w, pw_w, bn1, bn2, stride):
    g1, be1, m1, v1 = bn1
    g2, be2, m2, v2 = bn2
    y = jax.lax.conv_general_dilated(
        x, dw_w, (stride, stride), ((1, 1), (1, 1)),
        feature_group_count=x.shape[1],
        dimension_numbers=("NCHW", "OIHW", "NCHW"))
    y = ((y - m1[None, :, None, None]) / jnp.sqrt(v1[None, :, None, None] + _BN_EPS)
         * g1[None, :, None, None] + be1[None, :, None, None])
    y = jnp.maximum(y, 0.0)
    y = jax.lax.conv_general_dilated(
        y, pw_w, (1, 1), ((0, 0), (0, 0)),
        dimension_numbers=("NCHW", "OIHW", "NCHW"))
    y = ((y - m2[None, :, None, None]) / jnp.sqrt(v2[None, :, None, None] + _BN_EPS)
         * g2[None, :, None, None] + be2[None, :, None, None])
    return jnp.maximum(y, 0.0)


if __name__ == "__main__":
    # Small shapes consistent with the module: in_planes=4, out_planes=8,
    # input x: (2, 4, 16, 16) NCHW.
    N, C, Cout, H, W = 2, 4, 8, 16, 16

    key = jax.random.PRNGKey(0)
    kx, kdw, kpw, kg1, kb1, km1, kv1, kg2, kb2, km2, kv2 = jax.random.split(key, 11)

    x = jax.random.normal(kx, (N, C, H, W), jnp.float32)
    dw_w = 0.3 * jax.random.normal(kdw, (C, 1, 3, 3), jnp.float32)
    pw_w = 0.3 * jax.random.normal(kpw, (Cout, C, 1, 1), jnp.float32)

    bn1 = (1.0 + 0.1 * jax.random.normal(kg1, (C,), jnp.float32),      # gamma
           0.1 * jax.random.normal(kb1, (C,), jnp.float32),            # beta
           0.1 * jax.random.normal(km1, (C,), jnp.float32),            # running_mean
           0.9 + 0.1 * jax.random.uniform(kv1, (C,), jnp.float32))     # running_var
    bn2 = (1.0 + 0.1 * jax.random.normal(kg2, (Cout,), jnp.float32),
           0.1 * jax.random.normal(kb2, (Cout,), jnp.float32),
           0.1 * jax.random.normal(km2, (Cout,), jnp.float32),
           0.9 + 0.1 * jax.random.uniform(kv2, (Cout,), jnp.float32))

    ref1 = _reference(x, dw_w, pw_w, bn1, bn2, 1)
    ref2 = _reference(x, dw_w, pw_w, bn1, bn2, 2)

    # --- stride=1, bf16 MXU operands (default): weights prepared once and the
    #     apply path jitted -> the steady-state inference configuration. ------
    params = prepare_block_params(dw_w, pw_w, bn1, bn2, (H, W), stride=1,
                                  matmul_dtype=jnp.bfloat16)
    apply_jit = jax.jit(lambda xx: apply_block(xx, params))
    out_bf16 = jax.block_until_ready(apply_jit(x))
    assert out_bf16.shape == (N, Cout, H, W)
    assert jnp.allclose(out_bf16, ref1, rtol=5e-2, atol=5e-2), \
        "stride=1 bf16-MXU path mismatch vs reference"

    # --- stride=1, full f32 operands (tight numerical check; tolerance leaves
    #     headroom for the MXU's multi-pass f32 rounding). --------------------
    out_f32 = jax.block_until_ready(
        mobilenet_block(x, dw_w, pw_w, bn1, bn2, stride=1,
                        matmul_dtype=jnp.float32))
    assert jnp.allclose(out_f32, ref1, rtol=1e-3, atol=1e-3), \
        "stride=1 f32 path mismatch vs reference"

    # --- stride=2, same unified kernel (strided row selection) ---------------
    out_s2 = jax.block_until_ready(
        mobilenet_block(x, dw_w, pw_w, bn1, bn2, stride=2,
                        matmul_dtype=jnp.float32))
    assert out_s2.shape == (N, Cout, H // 2, W // 2)
    assert jnp.allclose(out_s2, ref2, rtol=1e-3, atol=1e-3), \
        "stride=2 path mismatch vs reference"

    print("KERNEL_OK")
</pallas_src>

<mosaic_0001>
module attributes {stable_mosaic.version = 11 : i64} {
  func.func @_block_kernel(%arg0: i32, %arg1: memref<1x16x64xf32, #tpu.memory_space<vmem>>, %arg2: memref<193x64xbf16, #tpu.memory_space<vmem>>, %arg3: memref<65x128xbf16, #tpu.memory_space<vmem>>, %arg4: memref<1x16x128xf32, #tpu.memory_space<vmem>>) attributes {dimension_semantics = [#tpu.dimension_semantics<parallel>], iteration_bounds = array<i64: 2>, scalar_prefetch = 0 : i64, scratch_operands = 0 : i64, tpu.core_type = #tpu.core_type<tc>, window_params = [{transform_indices = @transform_0, window_bounds = array<i64: 1, 16, 64>}, {pipeline_mode = #tpu.pipeline_mode<synchronous>, transform_indices = @transform_1, window_bounds = array<i64: 193, 64>}, {pipeline_mode = #tpu.pipeline_mode<synchronous>, transform_indices = @transform_2, window_bounds = array<i64: 65, 128>}, {transform_indices = @transform_3, window_bounds = array<i64: 1, 16, 128>}]} {
    %c0 = arith.constant 0 : index
    %c0_0 = arith.constant 0 : index
    %c0_1 = arith.constant 0 : index
    %0 = vector.load %arg1[%c0, %c0_0, %c0_1] : memref<1x16x64xf32, #tpu.memory_space<vmem>>, vector<1x16x64xf32>
    %1 = vector.shape_cast %0 : vector<1x16x64xf32> to vector<16x64xf32>
    %2 = arith.truncf %1 : vector<16x64xf32> to vector<16x64xbf16>
    %cst = arith.constant 0.000000e+00 : bf16
    %3 = vector.broadcast %cst : bf16 to vector<1x64xbf16>
    %cst_2 = arith.constant 0.000000e+00 : bf16
    %4 = vector.broadcast %cst_2 : bf16 to vector<1x64xbf16>
    %5 = tpu.concatenate %3, %2, %4 in 0 : vector<1x64xbf16>, vector<16x64xbf16>, vector<1x64xbf16> -> vector<18x64xbf16>
    %6 = vector.extract_strided_slice %5 {offsets = [0, 0], sizes = [16, 64], strides = [1, 1]} : vector<18x64xbf16> to vector<16x64xbf16>
    %c0_3 = arith.constant 0 : index
    %c0_4 = arith.constant 0 : index
    %7 = vector.load %arg2[%c0_3, %c0_4] : memref<193x64xbf16, #tpu.memory_space<vmem>>, vector<64x64xbf16>
    %cst_5 = arith.constant dense<0.000000e+00> : vector<16x64xf32>
    %8 = tpu.matmul %6, %7, %cst_5 {dimension_numbers = #tpu.dot_dimension_numbers<[1], [0], [0], [1], [0, 0, 1, 1], [], []>} : vector<16x64xbf16>, vector<64x64xbf16>, vector<16x64xf32> -> vector<16x64xf32>
    %9 = vector.extract_strided_slice %5 {offsets = [1, 0], sizes = [16, 64], strides = [1, 1]} : vector<18x64xbf16> to vector<16x64xbf16>
    %c64 = arith.constant 64 : index
    %c0_6 = arith.constant 0 : index
    %10 = vector.load %arg2[%c64, %c0_6] : memref<193x64xbf16, #tpu.memory_space<vmem>>, vector<64x64xbf16>
    %cst_7 = arith.constant dense<0.000000e+00> : vector<16x64xf32>
    %11 = tpu.matmul %9, %10, %cst_7 {dimension_numbers = #tpu.dot_dimension_numbers<[1], [0], [0], [1], [0, 0, 1, 1], [], []>} : vector<16x64xbf16>, vector<64x64xbf16>, vector<16x64xf32> -> vector<16x64xf32>
    %12 = arith.addf %8, %11 : vector<16x64xf32>
    %13 = vector.extract_strided_slice %5 {offsets = [2, 0], sizes = [16, 64], strides = [1, 1]} : vector<18x64xbf16> to vector<16x64xbf16>
    %c128 = arith.constant 128 : index
    %c0_8 = arith.constant 0 : index
    %14 = vector.load %arg2[%c128, %c0_8] : memref<193x64xbf16, #tpu.memory_space<vmem>>, vector<64x64xbf16>
    %cst_9 = arith.constant dense<0.000000e+00> : vector<16x64xf32>
    %15 = tpu.matmul %13, %14, %cst_9 {dimension_numbers = #tpu.dot_dimension_numbers<[1], [0], [0], [1], [0, 0, 1, 1], [], []>} : vector<16x64xbf16>, vector<64x64xbf16>, vector<16x64xf32> -> vector<16x64xf32>
    %16 = arith.addf %12, %15 : vector<16x64xf32>
    %c192 = arith.constant 192 : index
    %c0_10 = arith.constant 0 : index
    %17 = vector.load %arg2[%c192, %c0_10] : memref<193x64xbf16, #tpu.memory_space<vmem>>, vector<1x64xbf16>
    %18 = arith.extf %17 : vector<1x64xbf16> to vector<1x64xf32>
    %19 = vector.broadcast %18 : vector<1x64xf32> to vector<16x64xf32>
    %20 = arith.addf %16, %19 : vector<16x64xf32>
    %cst_11 = arith.constant 0.000000e+00 : f32
    %21 = vector.broadcast %cst_11 : f32 to vector<16x64xf32>
    %22 = arith.maximumf %20, %21 : vector<16x64xf32>
    %c0_12 = arith.constant 0 : index
    %c0_13 = arith.constant 0 : index
    %23 = vector.load %arg3[%c0_12, %c0_13] : memref<65x128xbf16, #tpu.memory_space<vmem>>, vector<64x128xbf16>
    %c64_14 = arith.constant 64 : index
    %c0_15 = arith.constant 0 : index
    %24 = vector.load %arg3[%c64_14, %c0_15] : memref<65x128xbf16, #tpu.memory_space<vmem>>, vector<1x128xbf16>
    %25 = arith.extf %24 : vector<1x128xbf16> to vector<1x128xf32>
    %26 = arith.truncf %22 : vector<16x64xf32> to vector<16x64xbf16>
    %cst_16 = arith.constant dense<0.000000e+00> : vector<16x128xf32>
    %27 = tpu.matmul %26, %23, %cst_16 {dimension_numbers = #tpu.dot_dimension_numbers<[1], [0], [0], [1], [0, 0, 1, 1], [], []>} : vector<16x64xbf16>, vector<64x128xbf16>, vector<16x128xf32> -> vector<16x128xf32>
    %28 = vector.broadcast %25 : vector<1x128xf32> to vector<16x128xf32>
    %29 = arith.addf %27, %28 : vector<16x128xf32>
    %cst_17 = arith.constant 0.000000e+00 : f32
    %30 = vector.broadcast %cst_17 : f32 to vector<16x128xf32>
    %31 = arith.maximumf %29, %30 : vector<16x128xf32>
    %c0_18 = arith.constant 0 : index
    %c0_19 = arith.constant 0 : index
    %c0_20 = arith.constant 0 : index
    %32 = vector.load %arg4[%c0_18, %c0_19, %c0_20] : memref<1x16x128xf32, #tpu.memory_space<vmem>>, vector<1x16x128xf32>
    %33 = vector.shape_cast %32 : vector<1x16x128xf32> to vector<16x128xf32>
    %34 = vector.shape_cast %31 : vector<16x128xf32> to vector<1x16x128xf32>
    tpu.vector_store %arg4[%c0_18, %c0_19, %c0_20], %34 {strides = array<i32>} : memref<1x16x128xf32, #tpu.memory_space<vmem>>, vector<1x16x128xf32>,
    return
  }
  func.func @transform_0(%arg0: i32) -> (i32, i32, i32) {
    %c0_i32 = arith.constant 0 : i32
    %c0_i32_0 = arith.constant 0 : i32
    %c0_i32_1 = arith.constant 0 : i32
    return %arg0, %c0_i32, %c0_i32_0 : i32, i32, i32
  }
  func.func @transform_1(%arg0: i32) -> (i32, i32) {
    %c0_i32 = arith.constant 0 : i32
    %c0_i32_0 = arith.constant 0 : i32
    %c0_i32_1 = arith.constant 0 : i32
    return %c0_i32, %c0_i32_0 : i32, i32
  }
  func.func @transform_2(%arg0: i32) -> (i32, i32) {
    %c0_i32 = arith.constant 0 : i32
    %c0_i32_0 = arith.constant 0 : i32
    %c0_i32_1 = arith.constant 0 : i32
    return %c0_i32, %c0_i32_0 : i32, i32
  }
  func.func @transform_3(%arg0: i32) -> (i32, i32, i32) {
    %c0_i32 = arith.constant 0 : i32
    %c0_i32_0 = arith.constant 0 : i32
    %c0_i32_1 = arith.constant 0 : i32
    return %arg0, %c0_i32, %c0_i32_0 : i32, i32, i32
  }
}

</mosaic_0001>

<llo_original>
// kernel: _lambda_.1
$region0: #{_lambda_.1}
  #allocation0 [shape = 'u32[]', space=smem, size = 0x4, offset = 0x4, fixed_abs, tag = 'smem constant byte address 0x4 - core index']
  #allocation1 [shape = 'u32[72,128]{1,0:T(1,128)}', space=vmem, size = 0x9000, scoped, tag = 'internal scratch']
  %s0 = inlined_call_operand.vmem [shape: f32[2,16,64], index: 0, kind: input, shape index: {}]
  %s1 = inlined_call_operand.vmem [shape: bf16[193,64], index: 1, kind: input, shape index: {}]
  %s2 = inlined_call_operand.vmem [shape: bf16[65,128], index: 2, kind: input, shape index: {}]
  %s3 = inlined_call_operand.vmem [shape: f32[2,16,128], index: 3, kind: output, shape index: {}]
  %s4 = sld [smem:[#allocation0]]
  $region45: #{_lambda_.1} parent=0
    _
  %s6 = ssub.s32 1, %s4
  %s7 = scalar_select 0, %s6, %s4
  loop: start=0, step=1, limit=4
  $region2: #{_lambda_.1} parent=0 // loop_pre_header
    _
  $region3: #{_lambda_.1} parent=0 // loop_header
    %s9 = sphi 0, %s13
    %p10 = scmp.ge.s32.totalorder %s9, 4
    %s19 = sphi 0, %s21
    %s22 = sphi 0, %s19
    %s23 = sphi 0, %s22
    %s39 = sphi 0, %s23
    %s43 = sphi 0, %s43
    %s45 = sphi 0, %s43
    %s46 = sphi 0, %s45
    %s60 = sphi 0, %s46
    %s64 = sphi 0, %s64
    %s66 = sphi 0, %s64
    %s67 = sphi 0, %s66
    %s81 = sphi 0, %s67
    %s87 = sphi 0, %s89
    %s90 = sphi 0, %s87
    %s91 = sphi 0, %s90
    %s107 = sphi 0, %s91
  $region4: #{_lambda_.1} parent=0 // loop_header_branch
    %12 = sbr.rel (%p10) target = $region8
  $region5: #{_lambda_.1} parent=0 // loop_body
    %s14 = ssub.s32 %s9, 1
    %s15 = ssub.s32 %s9, 2
    %s16 = sadd.s32 %s9, 1
    %s17 = ssub.s32 %s9, %s16
    %p18 = scmp.eq.s32.totalorder %s17, 0
    %s20 = sadd.s32 %s19, 1
    %s21 = scalar_select %p18, %s19, %s20
    %p24 = pneg %p18
    %p25 = scmp.eq.s32.totalorder %s9, 1
    %p26 = por %p24, %p25
    %p27 = scmp.ne.s32.totalorder %s19, %s22
    %p28 = scmp.eq.s32.totalorder %s9, 0
    %p29 = por %p27, %p28
    %p30 = scmp.ne.s32.totalorder %s19, %s22
    %p31 = scmp.eq.s32.totalorder %s14, 1
    %p32 = por %p30, %p31
    %p33 = scmp.ne.s32.totalorder %s22, %s23
    %p34 = scmp.eq.s32.totalorder %s14, 0
    %p35 = por %p33, %p34
    %p36 = scmp.ne.s32.totalorder %s22, %s23
    %p37 = scmp.eq.s32.totalorder %s15, 1
    %p38 = por %p36, %p37
    %p40 = scmp.ne.s32.totalorder %s23, %s39
    %p41 = scmp.eq.s32.totalorder %s15, 0
    %p42 = por %p40, %p41
    %s44 = sadd.s32 %s43, 1
    %p47 = scmp.eq.s32.totalorder %s9, 1
    %p48 = scmp.ne.s32.totalorder %s43, %s45
    %p49 = scmp.eq.s32.totalorder %s9, 0
    %p50 = por %p48, %p49
    %p51 = scmp.ne.s32.totalorder %s43, %s45
    %p52 = scmp.eq.s32.totalorder %s14, 1
    %p53 = por %p51, %p52
    %p54 = scmp.ne.s32.totalorder %s45, %s46
    %p55 = scmp.eq.s32.totalorder %s14, 0
    %p56 = por %p54, %p55
    %p57 = scmp.ne.s32.totalorder %s45, %s46
    %p58 = scmp.eq.s32.totalorder %s15, 1
    %p59 = por %p57, %p58
    %p61 = scmp.ne.s32.totalorder %s46, %s60
    %p62 = scmp.eq.s32.totalorder %s15, 0
    %p63 = por %p61, %p62
    %s65 = sadd.s32 %s64, 1
    %p68 = scmp.eq.s32.totalorder %s9, 1
    %p69 = scmp.ne.s32.totalorder %s64, %s66
    %p70 = scmp.eq.s32.totalorder %s9, 0
    %p71 = por %p69, %p70
    %p72 = scmp.ne.s32.totalorder %s64, %s66
    %p73 = scmp.eq.s32.totalorder %s14, 1
    %p74 = por %p72, %p73
    %p75 = scmp.ne.s32.totalorder %s66, %s67
    %p76 = scmp.eq.s32.totalorder %s14, 0
    %p77 = por %p75, %p76
    %p78 = scmp.ne.s32.totalorder %s66, %s67
    %p79 = scmp.eq.s32.totalorder %s15, 1
    %p80 = por %p78, %p79
    %p82 = scmp.ne.s32.totalorder %s67, %s81
    %p83 = scmp.eq.s32.totalorder %s15, 0
    %p84 = por %p82, %p83
    %s85 = ssub.s32 %s9, %s16
    %p86 = scmp.eq.s32.totalorder %s85, 0
    %s88 = sadd.s32 %s87, 1
    %s89 = scalar_select %p86, %s87, %s88
    %p92 = pneg %p86
    %p93 = scmp.eq.s32.totalorder %s9, 1
    %p94 = por %p92, %p93
    %p95 = scmp.ne.s32.totalorder %s87, %s90
    %p96 = scmp.eq.s32.totalorder %s9, 0
    %p97 = por %p95, %p96
    %p98 = scmp.ne.s32.totalorder %s87, %s90
    %p99 = scmp.eq.s32.totalorder %s14, 1
    %p100 = por %p98, %p99
    %p101 = scmp.ne.s32.totalorder %s90, %s91
    %p102 = scmp.eq.s32.totalorder %s14, 0
    %p103 = por %p101, %p102
    %p104 = scmp.ne.s32.totalorder %s90, %s91
    %p105 = scmp.eq.s32.totalorder %s15, 1
    %p106 = por %p104, %p105
    %p108 = scmp.ne.s32.totalorder %s91, %s107
    %p109 = scmp.eq.s32.totalorder %s15, 0
    %p110 = por %p108, %p109
    %p111 = scmp.le.s32.totalorder 1, %s9
    %p112 = scmp.lt.s32.totalorder %s9, 3
    %p113 = pnand %p111, %p112
    %p114 = pneg %p113
    // Predicated region
    $region9: #{_lambda_.1} parent=5 // pred_check
      _
    $region10: #{_lambda_.1} parent=5 // pred_check_branch
      %116 = sbr.rel (%p113) target = $region12
    $region11: #{_lambda_.1} parent=5 // pred_region
      %s117 = ssub.s32 %s9, 1
      // Predicated region
      $region13: #{_lambda_.1} parent=11 // pred_check
        %p118 = pneg %p56
      $region14: #{_lambda_.1} parent=11 // pred_check_branch
        %120 = sbr.rel (%p118) target = $region16
      $region15: #{_lambda_.1} parent=11 // pred_region
        _
      $region16: #{_lambda_.1} parent=11 // pred_fallthru
        _
      // Predicated region
      $region17: #{_lambda_.1} parent=11 // pred_check
        %p121 = pneg %p77
      $region18: #{_lambda_.1} parent=11 // pred_check_branch
        %123 = sbr.rel (%p121) target = $region20
      $region19: #{_lambda_.1} parent=11 // pred_region
        _
      $region20: #{_lambda_.1} parent=11 // pred_fallthru
        _
    $region12: #{_lambda_.1} parent=5 // pred_fallthru
      _
    %p124 = scmp.lt.s32.totalorder %s9, 2
    // Predicated region
    $region21: #{_lambda_.1} parent=5 // pred_check
      %p125 = pneg %p124
    $region22: #{_lambda_.1} parent=5 // pred_check_branch
      %127 = sbr.rel (%p125) target = $region24
    $region23: #{_lambda_.1} parent=5 // pred_region
      // Predicated region
      $region25: #{_lambda_.1} parent=23 // pred_check
        %p128 = pneg %p29
      $region26: #{_lambda_.1} parent=23 // pred_check_branch
        %130 = sbr.rel (%p128) target = $region28
      $region27: #{_lambda_.1} parent=23 // pred_region
        %p131 = scmp.lt.s32.totalorder %s9, 1
        %s132 = scalar_select %p131, %s9, 1
        %s133 = smul.addr %s132, 2
        %s134 = smul.addr %s133, 8
        %s135 = scalar_lea.vmem %s0, %s134
      $region28: #{_lambda_.1} parent=23 // pred_fallthru
        _
    $region24: #{_lambda_.1} parent=5 // pred_fallthru
      _
    %p136 = scmp.le.s32.totalorder 1, %s9
    %p137 = scmp.lt.s32.totalorder %s9, 3
    %p138 = pnand %p136, %p137
    %p139 = pneg %p138
    // Predicated region
    $region29: #{_lambda_.1} parent=5 // pred_check
      _
    $region30: #{_lambda_.1} parent=5 // pred_check_branch
      %141 = sbr.rel (%p138) target = $region32
    $region31: #{_lambda_.1} parent=5 // pred_region
      %s142 = ssub.s32 %s9, 1
      %p143 = scmp.lt.s32.totalorder %s14, 1
      %s144 = scalar_select %p143, %s14, 1
      %s145 = smul.addr %s144, 2
      %s146 = smul.addr %s145, 8
      %s147 = scalar_lea.vmem %s0, %s146
      %p148 = pneg %p35
      %p149 = pneg %p32
      %p150 = pneg %p56
      %p151 = pneg %p53
      %p152 = pneg %p77
      %p153 = pneg %p74
      %p154 = pneg %p103
      %p155 = pneg %p100
      %p156 = scmp.lt.s32.totalorder %s14, 1
      %s157 = scalar_select %p156, %s14, 1
      %s158 = smul.addr %s157, 2
      %s159 = smul.addr %s158, 8
      %s160 = scalar_lea.vmem %s3, %s159
      %p161 = scmp.lt.s32.totalorder %s14, 1
      %s162 = scalar_select %p161, %s14, 1
      %s163 = smul.addr %s162, 2
      %s164 = smul.addr %s163, 8
      %s165 = scalar_lea.vmem %s0, %s164
      %p166 = scmp.lt.s32.totalorder %s14, 1
      %s167 = scalar_select %p166, %s14, 1
      %s168 = smul.addr %s167, 2
      %s169 = smul.addr %s168, 8
      %s170 = scalar_lea.vmem %s3, %s169
      %v172 = vld [vmem:[%s165] sm:$0xff]
      %v173 = vld [vmem:[%s165 + $0x8] sm:$0xff]
      %v174 = vpack.c.bf16 %v172, %v172
      %v175 = vpack.c.bf16 %v173, %v173
      %v178 = vunpack.c.l.b16 %v174
      %v179 = vunpack.c.l.b16 %v175
      %v180 = vpack.c.b16 %v179, %v178
      %v182 = vshrl.u32 %v180, 16
      %v184 = vrot.slane %v182, 7
      %v185 = vshll.u32 %v180, 16
      %v187 = vor.u32 %v184, %v185
      %vm190 = vcmask 1040384
      %vm191 = vsmask.f32 256
      %vm192 = vmand %vm190, %vm191
      %v193 = vsel %vm192, 0, %v187
      %v194 = vsel %vm192, %v184, 0
      %v195 = vld [vmem:[%s1] sm:$0xf]
      %v196 = vld [vmem:[%s1 + $0x4] sm:$0xf]
      %v197 = vld [vmem:[%s1 + $0x8] sm:$0xf]
      %v198 = vld [vmem:[%s1 + $0xc] sm:$0xf]
      %v199 = vld [vmem:[%s1 + $0x10] sm:$0xf]
      %v200 = vld [vmem:[%s1 + $0x14] sm:$0xf]
      %v201 = vld [vmem:[%s1 + $0x18] sm:$0xf]
      %v202 = vld [vmem:[%s1 + $0x1c] sm:$0xf]
      %v203 = vld [vmem:[%s1 + $0x20] sm:$0xf]
      %v204 = vld [vmem:[%s1 + $0x24] sm:$0xf]
      %v205 = vld [vmem:[%s1 + $0x28] sm:$0xf]
      %v206 = vld [vmem:[%s1 + $0x2c] sm:$0xf]
      %v207 = vld [vmem:[%s1 + $0x30] sm:$0xf]
      %v208 = vld [vmem:[%s1 + $0x34] sm:$0xf]
      %v209 = vld [vmem:[%s1 + $0x38] sm:$0xf]
      %v210 = vld [vmem:[%s1 + $0x3c] sm:$0xf]
      %vm211 = vsmask.f32 7424
      %v213 = vshrl.u32 %v193, 16
      %v215 = vshll.u32 %v193, 16
      %v217 = vrot.slane %v215, 1
      %v218 = vor.u32 %v213, %v217
      %v220 = vshll.u32 %v194, 16
      %v222 = vrot.slane %v220, 1
      %v223 = vsel %vm211, %v218, %v222
      %v232 = vunpack.c.l.b16 %v203
      %v233 = vunpack.c.l.b16 %v204
      %v234 = vunpack.c.l.b16 %v205
      %v235 = vunpack.c.l.b16 %v206
      %v236 = vunpack.c.l.b16 %v207
      %v237 = vunpack.c.l.b16 %v208
      %v238 = vunpack.c.l.b16 %v209
      %v239 = vunpack.c.l.b16 %v210
      %v240 = vpack.c.b16 %v233, %v232
      %v241 = vpack.c.b16 %v235, %v234
      %v242 = vpack.c.b16 %v237, %v236
      %v243 = vpack.c.b16 %v239, %v238
      %vm248 = vcmask 523264
      %v250 = vsel %vm248, %v223, 0
      %252 = vmatpush.bf16.msra.mxu0 0
      %253 = vmatpush.bf16.msra.mxu0 0
      %254 = vmatpush.bf16.msra.mxu0 0
      %255 = vmatpush.bf16.msra.mxu0 0
      %256 = vmatpush.bf16.msra.mxu0 %v243
      %257 = vmatpush.bf16.msra.mxu0 %v242
      %258 = vmatpush.bf16.msra.mxu0 %v241
      %259 = vmatpush.bf16.msra.mxu0 %v240
      %260 = vmatmul.bf16.gmra.mxu0 %v250
      %v261 = vpop.f32.mrf.mxu0
      %v262 = vadd.f32 0.0, %v261
      %v263 = vpop.f32.mrf.mxu0
      %v264 = vadd.f32 0.0, %v263
      %265 = vdwg.mxu0
      %v274 = vunpack.c.l.b16 %v195
      %v275 = vunpack.c.l.b16 %v196
      %v276 = vunpack.c.l.b16 %v197
      %v277 = vunpack.c.l.b16 %v198
      %v278 = vunpack.c.l.b16 %v199
      %v279 = vunpack.c.l.b16 %v200
      %v280 = vunpack.c.l.b16 %v201
      %v281 = vunpack.c.l.b16 %v202
      %v282 = vpack.c.b16 %v275, %v274
      %v283 = vpack.c.b16 %v277, %v276
      %v284 = vpack.c.b16 %v279, %v278
      %v285 = vpack.c.b16 %v281, %v280
      %v290 = vsel %vm248, %v193, 0
      %292 = vmatpush.bf16.msra.mxu0 0
      %293 = vmatpush.bf16.msra.mxu0 0
      %294 = vmatpush.bf16.msra.mxu0 0
      %295 = vmatpush.bf16.msra.mxu0 0
      %296 = vmatpush.bf16.msra.mxu0 %v285
      %297 = vmatpush.bf16.msra.mxu0 %v284
      %298 = vmatpush.bf16.msra.mxu0 %v283
      %299 = vmatpush.bf16.msra.mxu0 %v282
      %300 = vmatmul.bf16.gmra.mxu0 %v290
      %v301 = vpop.f32.mrf.mxu0
      %v302 = vadd.f32 %v262, %v301
      %v303 = vpop.f32.mrf.mxu0
      %v304 = vadd.f32 %v264, %v303
      %305 = vdwg.mxu0
      %v306 = vld [vmem:[%s1 + $0x40] sm:$0xf]
      %v307 = vld [vmem:[%s1 + $0x44] sm:$0xf]
      %v308 = vld [vmem:[%s1 + $0x48] sm:$0xf]
      %v309 = vld [vmem:[%s1 + $0x4c] sm:$0xf]
      %v310 = vld [vmem:[%s1 + $0x50] sm:$0xf]
      %v311 = vld [vmem:[%s1 + $0x54] sm:$0xf]
      %v312 = vld [vmem:[%s1 + $0x58] sm:$0xf]
      %v313 = vld [vmem:[%s1 + $0x5c] sm:$0xf]
      %vm316 = vcmask 1046528
      %v317 = vrot.slane %v193, 1
      %v318 = vrot.slane %v194, 1
      %v319 = vsel %vm316, %v317, %v318
      %v328 = vunpack.c.l.b16 %v306
      %v329 = vunpack.c.l.b16 %v307
      %v330 = vunpack.c.l.b16 %v308
      %v331 = vunpack.c.l.b16 %v309
      %v332 = vunpack.c.l.b16 %v310
      %v333 = vunpack.c.l.b16 %v311
      %v334 = vunpack.c.l.b16 %v312
      %v335 = vunpack.c.l.b16 %v313
      %v336 = vpack.c.b16 %v329, %v328
      %v337 = vpack.c.b16 %v331, %v330
      %v338 = vpack.c.b16 %v333, %v332
      %v339 = vpack.c.b16 %v335, %v334
      %v345 = vsel %vm248, %v319, 0
      %347 = vmatpush.bf16.msra.mxu0 0
      %348 = vmatpush.bf16.msra.mxu0 0
      %349 = vmatpush.bf16.msra.mxu0 0
      %350 = vmatpush.bf16.msra.mxu0 0
      %351 = vmatpush.bf16.msra.mxu0 %v339
      %352 = vmatpush.bf16.msra.mxu0 %v338
      %353 = vmatpush.bf16.msra.mxu0 %v337
      %354 = vmatpush.bf16.msra.mxu0 %v336
      %355 = vmatmul.bf16.gmra.mxu0 %v345
      %v356 = vpop.f32.mrf.mxu0
      %v357 = vadd.f32 0.0, %v356
      %v358 = vpop.f32.mrf.mxu0
      %v359 = vadd.f32 0.0, %v358
      %360 = vdwg.mxu0
      %v361 = vadd.f32 %v302, %v357
      %v362 = vadd.f32 %v304, %v359
      %v363 = vld [vmem:[%s1 + $0x60] sm:$0x1]
      %v364 = vunpack.c.l.bf16 %v363
      %v365 = vperm.slane %v364, 0
      %v366 = vadd.f32 %v361, %v365
      %v367 = vadd.f32 %v362, %v365
      %v368 = vmax.f32 %v366, 0.0
      %v369 = vmax.f32 %v367, 0.0
      %v370 = vld [vmem:[%s2] sm:$0xf]
      %v371 = vld [vmem:[%s2 + $0x4] sm:$0xf]
      %v372 = vld [vmem:[%s2 + $0x8] sm:$0xf]
      %v373 = vld [vmem:[%s2 + $0xc] sm:$0xf]
      %v374 = vld [vmem:[%s2 + $0x10] sm:$0xf]
      %v375 = vld [vmem:[%s2 + $0x14] sm:$0xf]
      %v376 = vld [vmem:[%s2 + $0x18] sm:$0xf]
      %v377 = vld [vmem:[%s2 + $0x1c] sm:$0xf]
      %v378 = vld [vmem:[%s2 + $0x20] sm:$0x1]
      %v379 = vunpack.c.l.bf16 %v378
      %v380 = vpack.c.bf16 %v369, %v368
      %v381 = vperm.slane %v379, 0
      %v390 = vunpack.c.l.b16 %v370
      %v391 = vunpack.c.l.b16 %v371
      %v392 = vunpack.c.l.b16 %v372
      %v393 = vunpack.c.l.b16 %v373
      %v394 = vunpack.c.l.b16 %v374
      %v395 = vunpack.c.l.b16 %v375
      %v396 = vunpack.c.l.b16 %v376
      %v397 = vunpack.c.l.b16 %v377
      %v398 = vpack.c.b16 %v391, %v390
      %v399 = vpack.c.b16 %v393, %v392
      %v400 = vpack.c.b16 %v395, %v394
      %v401 = vpack.c.b16 %v397, %v396
      %v407 = vsel %vm248, %v380, 0
      %409 = vmatpush.bf16.msra.mxu0 0
      %410 = vmatpush.bf16.msra.mxu0 0
      %411 = vmatpush.bf16.msra.mxu0 0
      %412 = vmatpush.bf16.msra.mxu0 0
      %413 = vmatpush.bf16.msra.mxu0 %v401
      %414 = vmatpush.bf16.msra.mxu0 %v400
      %415 = vmatpush.bf16.msra.mxu0 %v399
      %416 = vmatpush.bf16.msra.mxu0 %v398
      %417 = vmatmul.bf16.gmra.mxu0 %v407
      %v418 = vpop.f32.mrf.mxu0
      %v419 = vadd.f32 %v381, %v418
      %v420 = vpop.f32.mrf.mxu0
      %v421 = vadd.f32 %v381, %v420
      %422 = vdwg.mxu0
      %v423 = vmax.f32 %v419, 0.0
      %v424 = vmax.f32 %v421, 0.0
      %425 = vst [vmem:[%s170] sm:$0xff] %v423
      %426 = vst [vmem:[%s170 + $0x8] sm:$0xff] %v424
      %p427 = scmp.lt.s32.totalorder %s14, 1
      %s428 = scalar_select %p427, %s14, 1
      %s429 = smul.addr %s428, 2
      %s430 = smul.addr %s429, 8
      %s431 = scalar_lea.vmem %s3, %s430
      // Predicated region
      $region33: #{_lambda_.1} parent=31 // pred_check
        %p432 = pneg %p100
      $region34: #{_lambda_.1} parent=31 // pred_check_branch
        %434 = sbr.rel (%p432) target = $region36
      $region35: #{_lambda_.1} parent=31 // pred_region
        _
      $region36: #{_lambda_.1} parent=31 // pred_fallthru
        _
    $region32: #{_lambda_.1} parent=5 // pred_fallthru
      _
    %p435 = scmp.le.s32.totalorder 2, %s9
    // Predicated region
    $region37: #{_lambda_.1} parent=5 // pred_check
      %p436 = pneg %p435
    $region38: #{_lambda_.1} parent=5 // pred_check_branch
      %438 = sbr.rel (%p436) target = $region40
    $region39: #{_lambda_.1} parent=5 // pred_region
      %s439 = ssub.s32 %s9, 2
      // Predicated region
      $region41: #{_lambda_.1} parent=39 // pred_check
        %p440 = pneg %p106
      $region42: #{_lambda_.1} parent=39 // pred_check_branch
        %442 = sbr.rel (%p440) target = $region44
      $region43: #{_lambda_.1} parent=39 // pred_region
        %p443 = scmp.lt.s32.totalorder %s15, 1
        %s444 = scalar_select %p443, %s15, 1
        %s445 = smul.addr %s444, 2
        %s446 = smul.addr %s445, 8
        %s447 = scalar_lea.vmem %s3, %s446
      $region44: #{_lambda_.1} parent=39 // pred_fallthru
        _
    $region40: #{_lambda_.1} parent=5 // pred_fallthru
      _
  $region6: #{_lambda_.1} parent=0 // loop_footer
    %s13 = sadd.s32 1, %s9
  $region7: #{_lambda_.1} parent=0 // loop_footer_branch
    %8 = sbr.rel target = $region3
  $region8: #{_lambda_.1} parent=0 // loop_exit
    _

</llo_original>
